<compile_context>
chip_gen: v7x
topology: tpu7x:2x2x1
jax: 0.10.0
libtpu: 0.0.40
codegen_flags: <defaults>
</compile_context>

<pallas_src>
import functools

import jax
import jax.numpy as jnp
from jax.experimental import pallas as pl
from jax.experimental.pallas import tpu as pltpu


# ----------------------------- configs ------------------------------------
class Configs:
    num_classes = 6
    img_width = 16
    patch_size = 4
    batch_size = 2
    input_length = 2
    total_length = 4
    num_samples = 1
    kl_beta = 0.001


# --------------------------- Pallas kernels --------------------------------
def _fused_embed_kernel(x_ref, w_ref, b_ref, o_ref):
    # x: (M, K) augmented rows [frame pixels (H*W*Cin) | one-hot class]
    # w: (K, N) block-diagonal 1x1-conv weight + pixel-permuted class weight
    # o: (M, N) with N = H*W*2C: per pixel [conv_out(16) | class_emb(16)]
    o_ref[...] = jnp.dot(x_ref[...], w_ref[...],
                         preferred_element_type=jnp.float32) + b_ref[...]


def pallas_fused_embed(x_aug, w_big, b_big):
    M, K = x_aug.shape
    N = w_big.shape[1]
    return pl.pallas_call(
        _fused_embed_kernel,
        out_shape=jax.ShapeDtypeStruct((M, N), jnp.float32),
        grid=(1,),
        in_specs=[pl.BlockSpec((M, K), lambda i: (0, 0)),
                  pl.BlockSpec((K, N), lambda i: (0, 0)),
                  pl.BlockSpec((1, N), lambda i: (0, 0))],
        out_specs=pl.BlockSpec((M, N), lambda i: (0, 0)),
    )(x_aug, w_big, b_big)


def _fused_loss_kernel(mu_ref, lv_ref, mup_ref, lvp_ref, eps_ref, ra_ref, rb_ref,
                       z_ref, kl_ref, mse_ref, *, inv_batch, inv_n):
    mu, lv = mu_ref[...], lv_ref[...]
    mup, lvp = mup_ref[...], lvp_ref[...]
    # reparameterize: eps * exp(0.5*logvar) + mu
    z_ref[...] = eps_ref[...] * jnp.exp(0.5 * lv) + mu
    # kl_criterion: log(s2/s1) + (exp(lv1) + (mu1-mu2)^2) / (2*exp(lv2)) - 1/2
    # (divide replaced by multiply with 0.5*exp(-lv2))
    kld = (0.5 * (lvp - lv)
           + (jnp.exp(lv) + (mu - mup) ** 2) * (0.5 * jnp.exp(-lvp))
           - 0.5)
    kl_ref[0, 0] = jnp.sum(kld) * inv_batch
    # first-frame reconstruction MSE (mean over all elements)
    d = ra_ref[...] - rb_ref[...]
    mse_ref[0, 0] = jnp.sum(d * d) * inv_n


def pallas_fused_losses(mu, logvar, mu_prior, logvar_prior, eps,
                        recon_a, recon_b, batch_size):
    B, L = mu.shape
    z, kl, mse = pl.pallas_call(
        functools.partial(_fused_loss_kernel,
                          inv_batch=1.0 / float(batch_size),
                          inv_n=1.0 / float(recon_a.size)),
        out_shape=(jax.ShapeDtypeStruct((B, L), jnp.float32),
                   jax.ShapeDtypeStruct((1, 1), jnp.float32),
                   jax.ShapeDtypeStruct((1, 1), jnp.float32)),
        out_specs=(pl.BlockSpec(memory_space=pltpu.MemorySpace.VMEM),
                   pl.BlockSpec(memory_space=pltpu.MemorySpace.SMEM),
                   pl.BlockSpec(memory_space=pltpu.MemorySpace.SMEM)),
    )(mu, logvar, mu_prior, logvar_prior, eps, recon_a, recon_b)
    return z, kl[0, 0], mse[0, 0]


# --------------------------- layout glue -----------------------------------
def reshape_patchback_cl(image_cl, batch, seq_len, patch_size, height, width):
    # Channels-last equivalent of torch reshape_patchback.
    # image_cl: (batch, seq_len, height, width, patch_size*patch_size)
    a = image_cl.reshape(batch, seq_len, height, width, patch_size, patch_size)
    a = jnp.transpose(a, (0, 1, 2, 4, 3, 5))
    return a.reshape(batch, seq_len, 1, height * patch_size, width * patch_size)


# ------------------------------ model --------------------------------------
class RNNPallas:
    """Pallas port of the compute defined inside RNN itself (channels-last).

    # TODO(synk): shared_encoder, latent_encoder, encoder, decoder, Prior,
    # Prior_FP and head_reconstructor are external modules whose definitions
    # are not part of the reference file, so their internals are not translated.
    """

    def __init__(self, num_layers, num_hidden, configs, key):
        self.configs = configs
        self.num_layers = num_layers
        self.num_hidden = num_hidden
        d_out = configs.img_width * configs.img_width          # 256
        pp = configs.patch_size * configs.patch_size           # 16 (Cin = Cout)
        H = W = configs.img_width // configs.patch_size        # 4
        HW = H * W
        nc = configs.num_classes
        k1, k2, k3, k4 = jax.random.split(key, 4)
        # embed_class = nn.Linear(num_classes, img_width*img_width)
        bcb = 1.0 / (nc ** 0.5)
        self.Wc = jax.random.uniform(k1, (nc, d_out), jnp.float32, -bcb, bcb)
        self.bc = jax.random.uniform(k2, (d_out,), jnp.float32, -bcb, bcb)
        # embed_data = nn.Conv2d(pp, pp, kernel_size=1)
        bdb = 1.0 / (pp ** 0.5)
        self.Wd = jax.random.uniform(k3, (pp, pp, 1, 1), jnp.float32, -bdb, bdb)
        self.bd = jax.random.uniform(k4, (pp,), jnp.float32, -bdb, bdb)

        # ---- build the fused (conv1x1 + class-embed) weight once at init ----
        # Row layout of the augmented input: [pixel p, channel k] then class j.
        # Column layout of the output:       [pixel p, conv c | class c].
        Wd_mat = self.Wd.reshape(pp, pp).T                      # (Cin, Cout)
        conv_blk = jnp.einsum('pq,kc->pkqc',
                              jnp.eye(HW, dtype=jnp.float32), Wd_mat)
        conv_blk = jnp.concatenate(
            [conv_blk, jnp.zeros((HW, pp, HW, pp), jnp.float32)], axis=-1)
        conv_part = conv_blk.reshape(HW * pp, HW * 2 * pp)      # (256, 512)
        # embed_class output index = c*HW + p  (torch view (B, C, H, W));
        # permute to channels-last pixel order (p, c).
        Wc_pix = jnp.transpose(self.Wc.reshape(nc, pp, HW), (0, 2, 1))
        class_blk = jnp.concatenate(
            [jnp.zeros((nc, HW, pp), jnp.float32), Wc_pix], axis=-1)
        class_part = class_blk.reshape(nc, HW * 2 * pp)         # (6, 512)
        self.W_big = jnp.concatenate([conv_part, class_part], axis=0)  # (262, 512)
        bd_pix = jnp.broadcast_to(self.bd[None, :], (HW, pp))
        bc_pix = jnp.transpose(self.bc.reshape(pp, HW), (1, 0))
        self.b_big = jnp.concatenate([bd_pix, bc_pix],
                                     axis=-1).reshape(1, HW * 2 * pp)   # (1, 512)

    def forward(self, frames_tensor, mask_true, category, key, is_train=True):
        cfg = self.configs
        B, T, H, W, C = frames_tensor.shape     # channels-last; no NCHW permute
        # TODO(synk): mask_true is only used for scheduled sampling, which
        # needs x_gen from the undefined decoder; it is unused here.
        del mask_true

        y_gt = jax.nn.one_hot(category, cfg.num_classes, dtype=jnp.float32)

        # ----- first-frame reconstruction branch -----
        first_frames_patchback = reshape_patchback_cl(
            frames_tensor[:, :1], B, 1, cfg.patch_size, H, W)   # (B,1,1,Hp,Wp)

        latent_dim = 128
        # TODO(synk): latent_encoder / prior_fp / head_reconstructor are
        # undefined externally; deterministic stand-in latents / frames are
        # used only so RNN's own kl_criterion / reparameterize / MSE math runs
        # through the Pallas loss kernel.
        k1, k2, k3, k4, k5, k6 = jax.random.split(key, 6)
        mu = 0.1 * jax.random.normal(k1, (B, latent_dim), jnp.float32)
        logvar = 0.1 * jax.random.normal(k2, (B, latent_dim), jnp.float32)
        mu_prior = 0.1 * jax.random.normal(k3, (B, latent_dim), jnp.float32)
        logvar_prior = 0.1 * jax.random.normal(k4, (B, latent_dim), jnp.float32)
        eps = jax.random.normal(k5, (B, latent_dim), jnp.float32)
        gen_first_frame = 0.1 * jax.random.normal(
            k6, first_frames_patchback[:, 0].shape, jnp.float32)

        recon_a = first_frames_patchback[:, 0].reshape(B, -1)
        recon_b = gen_first_frame.reshape(B, -1)
        z, loss_kl_1, loss_recon = pallas_fused_losses(
            mu, logvar, mu_prior, logvar_prior, eps, recon_a, recon_b,
            cfg.batch_size)
        z_recon = jnp.concatenate([z, y_gt], axis=1)

        # ----- per-time-step embedding hot path: one fused MXU matmul -----
        HW = H * W
        x_rows = frames_tensor.reshape(B * T, HW * C)            # (B*T, 256)
        y_rows = jnp.broadcast_to(
            y_gt[:, None, :], (B, T, cfg.num_classes)).reshape(B * T,
                                                               cfg.num_classes)
        x_aug = jnp.concatenate([x_rows, y_rows], axis=1)        # (B*T, 262)
        embed = pallas_fused_embed(x_aug, self.W_big, self.b_big)  # (B*T, 512)
        embed = embed.reshape(B, T, H, W, 2 * C)                 # channels-last

        # torch per-timestep loop builds cat([embed_data(frame), embed_class]);
        # that is exactly embed[:, t], so slices cover the whole loop.
        # TODO(synk): for t >= input_length the torch code mixes in x_gen from
        # the undefined decoder (scheduled sampling); ground truth is used.
        x_train_seq = embed[:, :cfg.total_length - 1]            # (B, T-1, H, W, 2C)
        x_target_seq = embed[:, 1:cfg.total_length]
        embedded_class = embed[:, 0, :, :, C:]                   # (B, H, W, C)

        loss_kl_2 = jnp.float32(0.0)   # TODO(synk): needs external encoder / Prior
        loss_pd = jnp.float32(0.0)     # TODO(synk): needs external decoder
        loss_kl = loss_kl_1 + loss_kl_2
        # torch: loss_kl_2 (==0 here) <= 10 -> else branch
        loss = loss_pd + cfg.total_length * loss_recon + 10 * cfg.kl_beta * loss_kl_1

        return dict(x_train_seq=x_train_seq, x_target_seq=x_target_seq,
                    loss=loss, loss_kl=loss_kl, loss_recon=loss_recon,
                    z_recon=z_recon, embedded_class=embedded_class,
                    mu=mu, logvar=logvar, mu_prior=mu_prior,
                    logvar_prior=logvar_prior, eps=eps,
                    first_frame_patchback=first_frames_patchback[:, 0],
                    gen_first_frame=gen_first_frame)


# ------------------------------ main ----------------------------------------
if __name__ == "__main__":
    cfg = Configs()
    key = jax.random.PRNGKey(0)
    kparam, kframes, kfwd = jax.random.split(key, 3)

    B = cfg.batch_size
    T = cfg.total_length
    H = W = cfg.img_width // cfg.patch_size          # 4
    C = cfg.patch_size * cfg.patch_size              # 16

    frames = jax.random.normal(kframes, (B, T, H, W, C), jnp.float32)
    mask_true = jnp.ones((B, max(T - cfg.input_length - 1, 1), H, W, C),
                         jnp.float32)
    category = jnp.array([1, 3], dtype=jnp.int32)

    model = RNNPallas(num_layers=2, num_hidden=32, configs=cfg, key=kparam)
    out = model.forward(frames, mask_true, category, kfwd, is_train=True)
    out = jax.block_until_ready(out)

    # ---- correctness checks against plain-JAX references (channels-last) ----
    y_gt = jax.nn.one_hot(category, cfg.num_classes, dtype=jnp.float32)

    # embed_class reference: torch view(B, C, H, W) -> channels-last (B, H, W, C)
    e = y_gt @ model.Wc + model.bc
    ref_class = jnp.transpose(e.reshape(B, C, H, W), (0, 2, 3, 1))
    assert jnp.allclose(out["embedded_class"], ref_class, atol=1e-4, rtol=1e-4)

    # embed_data (1x1 conv) + concat reference, channels-last, every timestep
    w_mat = model.Wd.reshape(C, C)                   # (Cout, Cin)
    for t in range(cfg.total_length - 1):
        ref_conv_t = (jnp.einsum("bhwk,ok->bhwo", frames[:, t], w_mat)
                      + model.bd[None, None, None, :])
        ref_xt = jnp.concatenate([ref_conv_t, ref_class], axis=-1)
        assert jnp.allclose(out["x_train_seq"][:, t], ref_xt,
                            atol=1e-4, rtol=1e-4)
        ref_conv_t1 = (jnp.einsum("bhwk,ok->bhwo", frames[:, t + 1], w_mat)
                       + model.bd[None, None, None, :])
        ref_xt1 = jnp.concatenate([ref_conv_t1, ref_class], axis=-1)
        assert jnp.allclose(out["x_target_seq"][:, t], ref_xt1,
                            atol=1e-4, rtol=1e-4)

    # reparameterize / kl_criterion / MSE references
    mu, lv = out["mu"], out["logvar"]
    mup, lvp = out["mu_prior"], out["logvar_prior"]
    ref_z = out["eps"] * jnp.exp(0.5 * lv) + mu
    assert jnp.allclose(out["z_recon"][:, :128], ref_z, atol=1e-4, rtol=1e-4)
    ref_kl = jnp.sum(0.5 * (lvp - lv)
                     + (jnp.exp(lv) + (mu - mup) ** 2) / (2.0 * jnp.exp(lvp))
                     - 0.5) / cfg.batch_size
    assert jnp.allclose(out["loss_kl"], ref_kl, atol=1e-4, rtol=1e-4)
    ref_mse = jnp.mean((out["first_frame_patchback"]
                        - out["gen_first_frame"]) ** 2)
    assert jnp.allclose(out["loss_recon"], ref_mse, atol=1e-5, rtol=1e-4)

    print("KERNEL_OK")
</pallas_src>

<mosaic_0001>
module attributes {stable_mosaic.version = 11 : i64} {
  func.func @_fused_loss_kernel(%arg0: memref<2x128xf32, #tpu.memory_space<vmem>>, %arg1: memref<2x128xf32, #tpu.memory_space<vmem>>, %arg2: memref<2x128xf32, #tpu.memory_space<vmem>>, %arg3: memref<2x128xf32, #tpu.memory_space<vmem>>, %arg4: memref<2x128xf32, #tpu.memory_space<vmem>>, %arg5: memref<2x256xf32, #tpu.memory_space<vmem>>, %arg6: memref<2x256xf32, #tpu.memory_space<vmem>>, %arg7: memref<2x128xf32, #tpu.memory_space<vmem>>, %arg8: memref<1x1xf32, #tpu.memory_space<smem>>, %arg9: memref<1x1xf32, #tpu.memory_space<smem>>) attributes {dimension_semantics = [], scalar_prefetch = 0 : i64, scratch_operands = 0 : i64, tpu.core_type = #tpu.core_type<tc>} {
    %c0 = arith.constant 0 : index
    %c0_0 = arith.constant 0 : index
    %0 = vector.load %arg0[%c0, %c0_0] : memref<2x128xf32, #tpu.memory_space<vmem>>, vector<2x128xf32>
    %c0_1 = arith.constant 0 : index
    %c0_2 = arith.constant 0 : index
    %1 = vector.load %arg1[%c0_1, %c0_2] : memref<2x128xf32, #tpu.memory_space<vmem>>, vector<2x128xf32>
    %c0_3 = arith.constant 0 : index
    %c0_4 = arith.constant 0 : index
    %2 = vector.load %arg2[%c0_3, %c0_4] : memref<2x128xf32, #tpu.memory_space<vmem>>, vector<2x128xf32>
    %c0_5 = arith.constant 0 : index
    %c0_6 = arith.constant 0 : index
    %3 = vector.load %arg3[%c0_5, %c0_6] : memref<2x128xf32, #tpu.memory_space<vmem>>, vector<2x128xf32>
    %c0_7 = arith.constant 0 : index
    %c0_8 = arith.constant 0 : index
    %4 = vector.load %arg4[%c0_7, %c0_8] : memref<2x128xf32, #tpu.memory_space<vmem>>, vector<2x128xf32>
    %cst = arith.constant 5.000000e-01 : f32
    %5 = vector.broadcast %cst : f32 to vector<2x128xf32>
    %6 = arith.mulf %5, %1 : vector<2x128xf32>
    %7 = math.exp %6 : vector<2x128xf32>
    %8 = arith.mulf %4, %7 : vector<2x128xf32>
    %9 = arith.addf %8, %0 : vector<2x128xf32>
    %c0_9 = arith.constant 0 : index
    %c0_10 = arith.constant 0 : index
    %10 = vector.load %arg7[%c0_9, %c0_10] : memref<2x128xf32, #tpu.memory_space<vmem>>, vector<2x128xf32>
    tpu.vector_store %arg7[%c0_9, %c0_10], %9 {strides = array<i32>} : memref<2x128xf32, #tpu.memory_space<vmem>>, vector<2x128xf32>,
    %11 = arith.subf %3, %1 : vector<2x128xf32>
    %cst_11 = arith.constant 5.000000e-01 : f32
    %12 = vector.broadcast %cst_11 : f32 to vector<2x128xf32>
    %13 = arith.mulf %12, %11 : vector<2x128xf32>
    %14 = math.exp %1 : vector<2x128xf32>
    %15 = arith.subf %0, %2 : vector<2x128xf32>
    %16 = arith.mulf %15, %15 : vector<2x128xf32>
    %17 = arith.addf %14, %16 : vector<2x128xf32>
    %cst_12 = arith.constant 0.000000e+00 : f32
    %18 = vector.broadcast %cst_12 : f32 to vector<2x128xf32>
    %19 = arith.subf %18, %3 : vector<2x128xf32>
    %20 = math.exp %19 : vector<2x128xf32>
    %cst_13 = arith.constant 5.000000e-01 : f32
    %21 = vector.broadcast %cst_13 : f32 to vector<2x128xf32>
    %22 = arith.mulf %21, %20 : vector<2x128xf32>
    %23 = arith.mulf %17, %22 : vector<2x128xf32>
    %24 = arith.addf %13, %23 : vector<2x128xf32>
    %cst_14 = arith.constant 5.000000e-01 : f32
    %25 = vector.broadcast %cst_14 : f32 to vector<2x128xf32>
    %26 = arith.subf %24, %25 : vector<2x128xf32>
    %27 = vector.shape_cast %26 : vector<2x128xf32> to vector<1x2x128xf32>
    %cst_15 = arith.constant dense<0.000000e+00> : vector<1xf32>
    %28 = vector.multi_reduction <add>, %27, %cst_15 [1, 2] : vector<1x2x128xf32> to vector<1xf32>
    %29 = vector.shape_cast %28 : vector<1xf32> to vector<1x1x1xf32>
    %30 = vector.extract %29[0, 0, 0] : f32 from vector<1x1x1xf32>
    %cst_16 = arith.constant 5.000000e-01 : f32
    %31 = arith.mulf %30, %cst_16 : f32
    %c0_17 = arith.constant 0 : index
    %c0_18 = arith.constant 0 : index
    %32 = memref.load %arg8[%c0_17, %c0_18] : memref<1x1xf32, #tpu.memory_space<smem>>
    memref.store %31, %arg8[%c0_17, %c0_18] : memref<1x1xf32, #tpu.memory_space<smem>>
    %c0_19 = arith.constant 0 : index
    %c0_20 = arith.constant 0 : index
    %33 = vector.load %arg5[%c0_19, %c0_20] : memref<2x256xf32, #tpu.memory_space<vmem>>, vector<2x256xf32>
    %c0_21 = arith.constant 0 : index
    %c0_22 = arith.constant 0 : index
    %34 = vector.load %arg6[%c0_21, %c0_22] : memref<2x256xf32, #tpu.memory_space<vmem>>, vector<2x256xf32>
    %35 = arith.subf %33, %34 : vector<2x256xf32>
    %36 = arith.mulf %35, %35 : vector<2x256xf32>
    %37 = vector.shape_cast %36 : vector<2x256xf32> to vector<1x2x256xf32>
    %cst_23 = arith.constant dense<0.000000e+00> : vector<1xf32>
    %38 = vector.multi_reduction <add>, %37, %cst_23 [1, 2] : vector<1x2x256xf32> to vector<1xf32>
    %39 = vector.shape_cast %38 : vector<1xf32> to vector<1x1x1xf32>
    %40 = vector.extract %39[0, 0, 0] : f32 from vector<1x1x1xf32>
    %cst_24 = arith.constant 0.001953125 : f32
    %41 = arith.mulf %40, %cst_24 : f32
    %c0_25 = arith.constant 0 : index
    %c0_26 = arith.constant 0 : index
    %42 = memref.load %arg9[%c0_25, %c0_26] : memref<1x1xf32, #tpu.memory_space<smem>>
    memref.store %41, %arg9[%c0_25, %c0_26] : memref<1x1xf32, #tpu.memory_space<smem>>
    return
  }
}

</mosaic_0001>

<llo_original>
// kernel: tpu_custom_call.1
$region0: #{tpu_custom_call.1}
  #allocation0 [shape = 'u32[]', space=smem, size = 0x4, offset = 0x4, fixed_abs, tag = 'smem constant byte address 0x4 - core index']
  #allocation1 [shape = 'u32[144,128]{1,0:T(1,128)}', space=vmem, size = 0x12000, scoped, tag = 'internal scratch']
  %s0 = inlined_call_operand.hbm [shape: f32[2,128], index: 0, kind: input, shape index: {}]
  %s1 = inlined_call_operand.vmem [shape: f32[2,128], index: 1, kind: input, shape index: {}]
  %s2 = inlined_call_operand.hbm [shape: f32[2,128], index: 2, kind: input, shape index: {}]
  %s3 = inlined_call_operand.hbm [shape: f32[2,128], index: 3, kind: input, shape index: {}]
  %s4 = inlined_call_operand.vmem [shape: f32[2,128], index: 4, kind: input, shape index: {}]
  %s5 = inlined_call_operand.vmem [shape: f32[2,256], index: 5, kind: input, shape index: {}]
  %s6 = inlined_call_operand.vmem [shape: f32[2,256], index: 6, kind: input, shape index: {}]
  %s7 = inlined_call_operand.hbm [shape: f32[2,128], index: 7, kind: output, shape index: {0}]
  %s8 = inlined_call_operand.hbm [shape: f32[1,1], index: 8, kind: output, shape index: {1}]
  %s9 = inlined_call_operand.hbm [shape: f32[1,1], index: 9, kind: output, shape index: {2}]
  %10 = xla_tuple %s7, %s8, %s9
  %s11 = sld [smem:[#allocation0]]
  $region66: #{tpu_custom_call.1} parent=0
    _
  %s13 = ssub.s32 1, %s11
  %s14 = scalar_select 0, %s13, %s11
  $region1: #{tpu_custom_call.1} parent=0
    #allocation2 [shape = 'u8[1024]{0}', space=vmem, size = 0x400, scoped, tag = 'input window, operand 0, single buffered']
    #allocation3 [shape = 's32[1]{0}', space=sflag, size = 0x4, scoped, tag = 'scoped memory for tpu_custom_call.1']
    #allocation4 [shape = 's32[1]{0}', space=sflag, size = 0x4, scoped, tag = 'scoped memory for tpu_custom_call.1']
    #allocation5 [shape = 's32[1]{0}', space=sflag, size = 0x4, scoped, tag = 'scoped memory for tpu_custom_call.1']
    #allocation6 [shape = 'u8[1024]{0}', space=vmem, size = 0x400, scoped, tag = 'input window, operand 2, single buffered']
    #allocation7 [shape = 's32[1]{0}', space=sflag, size = 0x4, scoped, tag = 'scoped memory for tpu_custom_call.1']
    #allocation8 [shape = 'u8[1024]{0}', space=vmem, size = 0x400, scoped, tag = 'input window, operand 3, single buffered']
    #allocation9 [shape = 'u8[1024]{0}', space=vmem, size = 0x400, scoped, tag = 'output window, operand 0, single buffered']
    #allocation10 [shape = 'u8[512]{0}', space=smem, size = 0x200, scoped, tag = 'output window, operand 1, single buffered']
    #allocation11 [shape = 'u8[512]{0}', space=smem, size = 0x200, scoped, tag = 'output window, operand 2, single buffered']
    #allocation12 [shape = 's32[1]{0}', space=sflag, size = 0x4, scoped, tag = 'scoped memory for tpu_custom_call.1']
    %15 = vsyncpa [#allocation3], 0
    %16 = vsyncpa [#allocation7], 0
    %17 = vsyncpa [#allocation4], 0
    %18 = vsyncpa [#allocation5], 0
    %19 = vsyncpa [#allocation12], 0
    // Predicated region
    $region2: #{tpu_custom_call.1} parent=1 // pred_check
      _
    $region3: #{tpu_custom_call.1} parent=1 // pred_check_branch
      %21 = sbr.rel (0) target = $region5
    $region4: #{tpu_custom_call.1} parent=1 // pred_region
      %s23 = ssub.s32 32, 32
      %24 = vsyncadd [#allocation3], %s23
      %s26 = sshll.u32 [#allocation2], 4
      %s27 = int_to_ptr.vmem [resolvable:$true] %s26
      %29 = dma.hbm_to_vmem [thread:$0]  %s0, 32, %s27, [#allocation3]
    $region5: #{tpu_custom_call.1} parent=1 // pred_fallthru
      _
    // Predicated region
    $region6: #{tpu_custom_call.1} parent=1 // pred_check
      _
    $region7: #{tpu_custom_call.1} parent=1 // pred_check_branch
      %31 = sbr.rel (0) target = $region9
    $region8: #{tpu_custom_call.1} parent=1 // pred_region
      _
    $region9: #{tpu_custom_call.1} parent=1 // pred_fallthru
      _
    // Predicated region
    $region10: #{tpu_custom_call.1} parent=1 // pred_check
      _
    $region11: #{tpu_custom_call.1} parent=1 // pred_check_branch
      %33 = sbr.rel (0) target = $region13
    $region12: #{tpu_custom_call.1} parent=1 // pred_region
      %s35 = ssub.s32 32, 32
      %36 = vsyncadd [#allocation7], %s35
      %s38 = sshll.u32 [#allocation6], 4
      %s39 = int_to_ptr.vmem [resolvable:$true] %s38
      %41 = dma.hbm_to_vmem [thread:$0]  %s2, 32, %s39, [#allocation7]
    $region13: #{tpu_custom_call.1} parent=1 // pred_fallthru
      _
    // Predicated region
    $region14: #{tpu_custom_call.1} parent=1 // pred_check
      _
    $region15: #{tpu_custom_call.1} parent=1 // pred_check_branch
      %43 = sbr.rel (0) target = $region17
    $region16: #{tpu_custom_call.1} parent=1 // pred_region
      %s45 = ssub.s32 32, 32
      %46 = vsyncadd [#allocation7], %s45
      %s48 = sshll.u32 [#allocation8], 4
      %s49 = int_to_ptr.vmem [resolvable:$true] %s48
      %51 = dma.hbm_to_vmem [thread:$0]  %s3, 32, %s49, [#allocation7]
    $region17: #{tpu_custom_call.1} parent=1 // pred_fallthru
      _
    // Predicated region
    $region18: #{tpu_custom_call.1} parent=1 // pred_check
      _
    $region19: #{tpu_custom_call.1} parent=1 // pred_check_branch
      %53 = sbr.rel (0) target = $region21
    $region20: #{tpu_custom_call.1} parent=1 // pred_region
      _
    $region21: #{tpu_custom_call.1} parent=1 // pred_fallthru
      _
    // Predicated region
    $region22: #{tpu_custom_call.1} parent=1 // pred_check
      _
    $region23: #{tpu_custom_call.1} parent=1 // pred_check_branch
      %55 = sbr.rel (0) target = $region25
    $region24: #{tpu_custom_call.1} parent=1 // pred_region
      _
    $region25: #{tpu_custom_call.1} parent=1 // pred_fallthru
      _
    // Predicated region
    $region26: #{tpu_custom_call.1} parent=1 // pred_check
      _
    $region27: #{tpu_custom_call.1} parent=1 // pred_check_branch
      %57 = sbr.rel (0) target = $region29
    $region28: #{tpu_custom_call.1} parent=1 // pred_region
      _
    $region29: #{tpu_custom_call.1} parent=1 // pred_fallthru
      _
    // Predicated region
    $region30: #{tpu_custom_call.1} parent=1 // pred_check
      _
    $region31: #{tpu_custom_call.1} parent=1 // pred_check_branch
      %59 = sbr.rel (0) target = $region33
    $region32: #{tpu_custom_call.1} parent=1 // pred_region
      %60 = dma.done [#allocation3], 32
    $region33: #{tpu_custom_call.1} parent=1 // pred_fallthru
      _
    // Predicated region
    $region34: #{tpu_custom_call.1} parent=1 // pred_check
      _
    $region35: #{tpu_custom_call.1} parent=1 // pred_check_branch
      %62 = sbr.rel (0) target = $region37
    $region36: #{tpu_custom_call.1} parent=1 // pred_region
      %63 = dma.done [#allocation7], 32
    $region37: #{tpu_custom_call.1} parent=1 // pred_fallthru
      _
    // Predicated region
    $region38: #{tpu_custom_call.1} parent=1 // pred_check
      _
    $region39: #{tpu_custom_call.1} parent=1 // pred_check_branch
      %65 = sbr.rel (0) target = $region41
    $region40: #{tpu_custom_call.1} parent=1 // pred_region
      %66 = dma.done [#allocation7], 32
    $region41: #{tpu_custom_call.1} parent=1 // pred_fallthru
      _
    %v67 = vld [vmem:[#allocation2] sm:$0x3]
    %v68 = vld [vmem:[%s1] sm:$0x3]
    %v69 = vld [vmem:[#allocation6] sm:$0x3]
    %v70 = vld [vmem:[#allocation8] sm:$0x3]
    %v71 = vld [vmem:[%s4] sm:$0x3]
    %v72 = vmul.f32 %v68, 0.5
    %v73 = vmul.f32 %v72, 1.442695
    %v74 = vpow.pop %v73
    %v75 = vmul.f32 %v71, %v74
    %v76 = vadd.f32 %v75, %v67
    %77 = vst [vmem:[#allocation9] sm:$0x3] %v76
    %v78 = vsub.f32 %v70, %v68
    %v79 = vmul.f32 %v78, 0.5
    %v80 = vmul.f32 %v68, 1.442695
    %v81 = vpow.pop %v80
    %v82 = vsub.f32 %v67, %v69
    %v83 = vmul.f32 %v82, %v82
    %v84 = vadd.f32 %v81, %v83
    %v85 = vsub.f32 0.0, %v70
    %v86 = vmul.f32 %v85, 1.442695
    %v87 = vpow.pop %v86
    %v88 = vmul.f32 %v87, 0.5
    %v89 = vmul.f32 %v84, %v88
    %v90 = vadd.f32 %v79, %v89
    %v91 = vsub.f32 %v90, 0.5
    %vm92 = vcmask 1041408
    %v93 = vsel %vm92, %v91, 0.0
    %94 = vadd.xlane.f32.xlu0 %v93
    %v95 = vpop.xlane.xlu0 %94
    %v96 = vrot.slane %v95, 4
    %v97 = vadd.f32 %v95, %v96
    %v98 = vrot.slane %v97, 2
    %v99 = vadd.f32 %v97, %v98
    %v100 = vrot.slane %v99, 1
    %v101 = vadd.f32 %v99, %v100
    %s102 = vtos %v101
    %s103 = smul.f32 %s102, 0.5
    %s104 = scalar_lea.smem [#allocation10], 0
    %105 = sst [smem:[%s104]] %s103
    %v106 = vld [vmem:[%s5] sm:$0xf]
    %v107 = vld [vmem:[%s6] sm:$0xf]
    %v108 = vsub.f32 %v106, %v107
    %v109 = vmul.f32 %v108, %v108
    %v112 = vunpack.c.l.s4 1983009808
    %v113 = vunpack.c.0.s8 %v112
    %v114 = vlaneseq
    %v115 = vshrl.u32 %v114, 7
    %v116 = vsub.s32 %v113, %v115
    %v117 = vrot.slane %v109, %v116
    %v118 = vcombine.high %v117, %v117
    %v121 = vsel %vm92, %v117, 0.0
    %v122 = vsel %vm92, %v118, 0.0
    %v123 = vadd.f32 %v121, %v122
    %124 = vadd.xlane.f32.xlu0 %v123
    %v125 = vpop.xlane.xlu0 %124
    %v126 = vrot.slane %v125, 4
    %v127 = vadd.f32 %v125, %v126
    %v128 = vrot.slane %v127, 2
    %v129 = vadd.f32 %v127, %v128
    %v130 = vrot.slane %v129, 1
    %v131 = vadd.f32 %v129, %v130
    %s132 = vtos %v131
    %s133 = smul.f32 %s132, 0.001953125
    %s134 = scalar_lea.smem [#allocation11], 0
    %135 = sst [smem:[%s134]] %s133
    // Predicated region
    $region42: #{tpu_custom_call.1} parent=1 // pred_check
      _
    $region43: #{tpu_custom_call.1} parent=1 // pred_check_branch
      %137 = sbr.rel (0) target = $region45
    $region44: #{tpu_custom_call.1} parent=1 // pred_region
      %s139 = ssub.s32 32, 32
      %140 = vsyncadd [#allocation4], %s139
      %s142 = sshll.u32 [#allocation9], 4
      %s143 = int_to_ptr.vmem [resolvable:$true] %s142
      %145 = dma.vmem_to_hbm [thread:$0]  %s143, 32, %s7, [#allocation4]
    $region45: #{tpu_custom_call.1} parent=1 // pred_fallthru
      _
    // Predicated region
    $region46: #{tpu_custom_call.1} parent=1 // pred_check
      _
    $region47: #{tpu_custom_call.1} parent=1 // pred_check_branch
      %147 = sbr.rel (0) target = $region49
    $region48: #{tpu_custom_call.1} parent=1 // pred_region
      %s149 = ssub.s32 16, 16
      %150 = vsyncadd [#allocation5], %s149
      %153 = dma.smem_to_hbm [#allocation10], 16, %s8, [#allocation5]
    $region49: #{tpu_custom_call.1} parent=1 // pred_fallthru
      _
    // Predicated region
    $region50: #{tpu_custom_call.1} parent=1 // pred_check
      _
    $region51: #{tpu_custom_call.1} parent=1 // pred_check_branch
      %155 = sbr.rel (0) target = $region53
    $region52: #{tpu_custom_call.1} parent=1 // pred_region
      %s157 = ssub.s32 16, 16
      %158 = vsyncadd [#allocation12], %s157
      %161 = dma.smem_to_hbm [#allocation11], 16, %s9, [#allocation12]
    $region53: #{tpu_custom_call.1} parent=1 // pred_fallthru
      _
    // Predicated region
    $region54: #{tpu_custom_call.1} parent=1 // pred_check
      _
    $region55: #{tpu_custom_call.1} parent=1 // pred_check_branch
      %163 = sbr.rel (0) target = $region57
    $region56: #{tpu_custom_call.1} parent=1 // pred_region
      %164 = dma.done [#allocation4], 32
    $region57: #{tpu_custom_call.1} parent=1 // pred_fallthru
      _
    // Predicated region
    $region58: #{tpu_custom_call.1} parent=1 // pred_check
      _
    $region59: #{tpu_custom_call.1} parent=1 // pred_check_branch
      %166 = sbr.rel (0) target = $region61
    $region60: #{tpu_custom_call.1} parent=1 // pred_region
      %167 = dma.done [#allocation5], 16
    $region61: #{tpu_custom_call.1} parent=1 // pred_fallthru
      _
    // Predicated region
    $region62: #{tpu_custom_call.1} parent=1 // pred_check
      _
    $region63: #{tpu_custom_call.1} parent=1 // pred_check_branch
      %169 = sbr.rel (0) target = $region65
    $region64: #{tpu_custom_call.1} parent=1 // pred_region
      %170 = dma.done [#allocation12], 16
    $region65: #{tpu_custom_call.1} parent=1 // pred_fallthru
      _
    %171 = sfence
    %172 = vsyncpa [#allocation3], 1
    %173 = vsyncpa [#allocation7], 1
    %174 = vsyncpa [#allocation4], 1
    %175 = vsyncpa [#allocation5], 1
    %176 = vsyncpa [#allocation12], 1

</llo_original>
